<compile_context>
chip_gen: v5e
topology: v5e:2x2
jax: 0.10.0
libtpu: 0.0.40
codegen_flags: <defaults>
</compile_context>

<pallas_src>
import functools

import jax
import jax.numpy as jnp
from jax.experimental import pallas as pl
from jax.experimental.pallas import tpu as pltpu

INPUT_SIZE = 10
HIDDEN_SIZE = 50
OUTPUT_SIZE = 2

_LANE = 128


def _round_up(n: int, m: int) -> int:
    return ((n + m - 1) // m) * m


def _choose_tb(batch: int, tb_max: int) -> int:
    """Batch (lane) tile: multiple of 128, large enough to amortize per-grid-step
    overhead, capped by tb_max (VMEM), and leaving >=2 grid blocks for big batches
    so the 'parallel' axis can shard across v7x's two TensorCores."""
    tb_max = max(_LANE, (tb_max // _LANE) * _LANE)
    if batch <= _LANE:
        return _LANE
    tb = min(tb_max, _round_up(pl.cdiv(batch, 2), _LANE))
    return max(tb, _LANE)


def mlp_kernel(x_ref, w1_ref, b1_ref, w2_ref, b2_ref, o_ref, *, use_bf16: bool):
    # x_ref:  (INPUT_SIZE, TB)   -- batch on lanes
    # w1_ref: (HIDDEN_SIZE, INPUT_SIZE), b1_ref: (HIDDEN_SIZE, 1)
    # w2_ref: (OUTPUT_SIZE, HIDDEN_SIZE), b2_ref: (OUTPUT_SIZE, 1)
    # o_ref:  (OUTPUT_SIZE, TB)  -- lane-dense output slab
    x = x_ref[...]
    w1 = w1_ref[...]
    w2 = w2_ref[...]
    if use_bf16:
        # bf16 MXU operands, f32 accumulation: ~3x fewer MXU passes than f32 inputs.
        x = x.astype(jnp.bfloat16)
        w1 = w1.astype(jnp.bfloat16)
        w2 = w2.astype(jnp.bfloat16)
    h = jnp.dot(w1, x, preferred_element_type=jnp.float32)       # (50, TB)
    h = jnp.maximum(h + b1_ref[...], 0.0)                        # bias + ReLU (VPU)
    if use_bf16:
        h = h.astype(jnp.bfloat16)
    out = jnp.dot(w2, h, preferred_element_type=jnp.float32)     # (2, TB)
    o_ref[...] = (out + b2_ref[...]).astype(o_ref.dtype)


@functools.partial(jax.jit, static_argnames=("tb_max", "use_bf16"))
def simple_network_forward_feature_major(x_t, w1, b1, w2, b2, *,
                                         tb_max=16384, use_bf16=True):
    """Feature-major entry point: x_t (INPUT_SIZE, B) -> (OUTPUT_SIZE, B).

    No wrapper relayouts and no batch padding (ragged last block handled by Pallas).
    """
    assert x_t.shape[0] == INPUT_SIZE
    batch = x_t.shape[1]
    tb = _choose_tb(batch, tb_max)
    assert tb % _LANE == 0, "batch tile must be a multiple of 128 lanes"
    num_blocks = pl.cdiv(batch, tb)

    param_bytes = 4 * (HIDDEN_SIZE * INPUT_SIZE + HIDDEN_SIZE
                       + OUTPUT_SIZE * HIDDEN_SIZE + OUTPUT_SIZE)
    cost = pl.CostEstimate(
        flops=2 * batch * (INPUT_SIZE * HIDDEN_SIZE + HIDDEN_SIZE * OUTPUT_SIZE),
        transcendentals=0,
        bytes_accessed=4 * batch * (INPUT_SIZE + OUTPUT_SIZE) + param_bytes,
    )

    return pl.pallas_call(
        functools.partial(mlp_kernel, use_bf16=use_bf16),
        out_shape=jax.ShapeDtypeStruct((OUTPUT_SIZE, batch), jnp.float32),
        grid=(num_blocks,),
        in_specs=[
            # Streamed, double-buffered x tile: batch on the lane axis.
            pl.BlockSpec((INPUT_SIZE, tb), lambda i: (0, i)),
            # Weights / biases: full blocks, constant index_map -> resident.
            pl.BlockSpec((HIDDEN_SIZE, INPUT_SIZE), lambda i: (0, 0)),
            pl.BlockSpec((HIDDEN_SIZE, 1), lambda i: (0, 0)),
            pl.BlockSpec((OUTPUT_SIZE, HIDDEN_SIZE), lambda i: (0, 0)),
            pl.BlockSpec((OUTPUT_SIZE, 1), lambda i: (0, 0)),
        ],
        out_specs=pl.BlockSpec((OUTPUT_SIZE, tb), lambda i: (0, i)),
        compiler_params=pltpu.CompilerParams(
            dimension_semantics=("parallel",),
            vmem_limit_bytes=32 * 1024 * 1024,
        ),
        cost_estimate=cost,
    )(x_t, w1, b1, w2, b2)


@functools.partial(jax.jit, static_argnames=("tb_max", "use_bf16"))
def simple_network_forward(x, w1, b1, w2, b2, *, tb_max=16384, use_bf16=True):
    """PyTorch-layout wrapper: x (B, INPUT_SIZE) -> (B, OUTPUT_SIZE).

    w1: (50, 10), b1: (50, 1), w2: (2, 50), b2: (2, 1) (nn.Linear (out,in) layout).
    """
    out_t = simple_network_forward_feature_major(
        x.T, w1, b1, w2, b2, tb_max=tb_max, use_bf16=use_bf16)
    return out_t.T


def init_params(key):
    """Deterministic init mimicking nn.Linear's uniform(-1/sqrt(fan_in), 1/sqrt(fan_in)).

    Weights in the PyTorch (out_features, in_features) layout; biases as
    (out_features, 1) columns so they broadcast along the lane (batch) axis in-kernel.
    """
    k1, k2, k3, k4 = jax.random.split(key, 4)
    bound1 = 1.0 / jnp.sqrt(INPUT_SIZE)
    bound2 = 1.0 / jnp.sqrt(HIDDEN_SIZE)
    w1 = jax.random.uniform(k1, (HIDDEN_SIZE, INPUT_SIZE), jnp.float32, -bound1, bound1)
    b1 = jax.random.uniform(k2, (HIDDEN_SIZE, 1), jnp.float32, -bound1, bound1)
    w2 = jax.random.uniform(k3, (OUTPUT_SIZE, HIDDEN_SIZE), jnp.float32, -bound2, bound2)
    b2 = jax.random.uniform(k4, (OUTPUT_SIZE, 1), jnp.float32, -bound2, bound2)
    return w1, b1, w2, b2


def reference_forward(x, w1, b1, w2, b2):
    h = jnp.maximum(x @ w1.T + b1[:, 0], 0.0)
    return h @ w2.T + b2[:, 0]


if __name__ == "__main__":
    key = jax.random.PRNGKey(0)
    kx, kp = jax.random.split(key)
    w1, b1, w2, b2 = init_params(kp)

    # Small batch, exact f32 path (strict tolerance).
    batch = 8
    x = jax.random.normal(kx, (batch, INPUT_SIZE), jnp.float32)
    ref = reference_forward(x, w1, b1, w2, b2)
    out_f32 = simple_network_forward(x, w1, b1, w2, b2, use_bf16=False)
    jax.block_until_ready(out_f32)
    assert out_f32.shape == (batch, OUTPUT_SIZE)
    assert jnp.allclose(out_f32, ref, atol=1e-5, rtol=1e-5)

    # Default bf16-matmul path (f32 accumulate) -- loosened tolerance.
    out_bf16 = simple_network_forward(x, w1, b1, w2, b2)
    jax.block_until_ready(out_bf16)
    assert jnp.allclose(out_bf16, ref, atol=5e-2, rtol=5e-2)

    # Ragged multi-block batch (B=513 -> tb=384, 2 grid blocks, ragged last block,
    # no jnp.pad anywhere).
    batch2 = 513
    x2 = jax.random.normal(jax.random.PRNGKey(1), (batch2, INPUT_SIZE), jnp.float32)
    ref2 = reference_forward(x2, w1, b1, w2, b2)

    out2_f32 = simple_network_forward(x2, w1, b1, w2, b2, use_bf16=False)
    jax.block_until_ready(out2_f32)
    assert out2_f32.shape == (batch2, OUTPUT_SIZE)
    assert jnp.allclose(out2_f32, ref2, atol=1e-5, rtol=1e-5)

    out2_bf16 = simple_network_forward(x2, w1, b1, w2, b2)
    jax.block_until_ready(out2_bf16)
    assert jnp.allclose(out2_bf16, ref2, atol=5e-2, rtol=5e-2)

    # Feature-major entry point (zero wrapper relayouts).
    out_fm = simple_network_forward_feature_major(x2.T, w1, b1, w2, b2, use_bf16=False)
    jax.block_until_ready(out_fm)
    assert out_fm.shape == (OUTPUT_SIZE, batch2)
    assert jnp.allclose(out_fm.T, ref2, atol=1e-5, rtol=1e-5)

    print("KERNEL_OK")
</pallas_src>

<mosaic_0001>
module attributes {stable_mosaic.version = 11 : i64} {
  func.func @mlp_kernel(%arg0: i32, %arg1: memref<10x128xf32, #tpu.memory_space<vmem>>, %arg2: memref<50x10xf32, #tpu.memory_space<vmem>>, %arg3: memref<50x1xf32, #tpu.memory_space<vmem>>, %arg4: memref<2x50xf32, #tpu.memory_space<vmem>>, %arg5: memref<2x1xf32, #tpu.memory_space<vmem>>, %arg6: memref<2x128xf32, #tpu.memory_space<vmem>>) attributes {dimension_semantics = [#tpu.dimension_semantics<parallel>], iteration_bounds = array<i64: 1>, scalar_prefetch = 0 : i64, scratch_operands = 0 : i64, tpu.core_type = #tpu.core_type<tc>, window_params = [{transform_indices = @transform_0, window_bounds = array<i64: 10, 128>}, {pipeline_mode = #tpu.pipeline_mode<synchronous>, transform_indices = @transform_1, window_bounds = array<i64: 50, 10>}, {pipeline_mode = #tpu.pipeline_mode<synchronous>, transform_indices = @transform_2, window_bounds = array<i64: 50, 1>}, {pipeline_mode = #tpu.pipeline_mode<synchronous>, transform_indices = @transform_3, window_bounds = array<i64: 2, 50>}, {pipeline_mode = #tpu.pipeline_mode<synchronous>, transform_indices = @transform_4, window_bounds = array<i64: 2, 1>}, {transform_indices = @transform_5, window_bounds = array<i64: 2, 128>}]} {
    %c0 = arith.constant 0 : index
    %c0_0 = arith.constant 0 : index
    %0 = vector.load %arg1[%c0, %c0_0] : memref<10x128xf32, #tpu.memory_space<vmem>>, vector<10x128xf32>
    %c0_1 = arith.constant 0 : index
    %c0_2 = arith.constant 0 : index
    %1 = vector.load %arg2[%c0_1, %c0_2] : memref<50x10xf32, #tpu.memory_space<vmem>>, vector<50x10xf32>
    %c0_3 = arith.constant 0 : index
    %c0_4 = arith.constant 0 : index
    %2 = vector.load %arg4[%c0_3, %c0_4] : memref<2x50xf32, #tpu.memory_space<vmem>>, vector<2x50xf32>
    %cst = arith.constant dense<0.000000e+00> : vector<50x128xf32>
    %3 = tpu.matmul %1, %0, %cst {dimension_numbers = #tpu.dot_dimension_numbers<[1], [0], [0], [1], [0, 0, 1, 1], [], []>} : vector<50x10xf32>, vector<10x128xf32>, vector<50x128xf32> -> vector<50x128xf32>
    %c0_5 = arith.constant 0 : index
    %c0_6 = arith.constant 0 : index
    %4 = vector.load %arg3[%c0_5, %c0_6] : memref<50x1xf32, #tpu.memory_space<vmem>>, vector<50x1xf32>
    %5 = vector.broadcast %4 : vector<50x1xf32> to vector<50x128xf32>
    %6 = arith.addf %3, %5 : vector<50x128xf32>
    %cst_7 = arith.constant 0.000000e+00 : f32
    %7 = vector.broadcast %cst_7 : f32 to vector<50x128xf32>
    %8 = arith.maximumf %6, %7 : vector<50x128xf32>
    %cst_8 = arith.constant dense<0.000000e+00> : vector<2x128xf32>
    %9 = tpu.matmul %2, %8, %cst_8 {dimension_numbers = #tpu.dot_dimension_numbers<[1], [0], [0], [1], [0, 0, 1, 1], [], []>} : vector<2x50xf32>, vector<50x128xf32>, vector<2x128xf32> -> vector<2x128xf32>
    %c0_9 = arith.constant 0 : index
    %c0_10 = arith.constant 0 : index
    %10 = vector.load %arg5[%c0_9, %c0_10] : memref<2x1xf32, #tpu.memory_space<vmem>>, vector<2x1xf32>
    %11 = vector.broadcast %10 : vector<2x1xf32> to vector<2x128xf32>
    %12 = arith.addf %9, %11 : vector<2x128xf32>
    %c0_11 = arith.constant 0 : index
    %c0_12 = arith.constant 0 : index
    %13 = vector.load %arg6[%c0_11, %c0_12] : memref<2x128xf32, #tpu.memory_space<vmem>>, vector<2x128xf32>
    tpu.vector_store %arg6[%c0_11, %c0_12], %12 {strides = array<i32>} : memref<2x128xf32, #tpu.memory_space<vmem>>, vector<2x128xf32>,
    return
  }
  func.func @transform_0(%arg0: i32) -> (i32, i32) {
    %c0_i32 = arith.constant 0 : i32
    %c0_i32_0 = arith.constant 0 : i32
    return %c0_i32, %arg0 : i32, i32
  }
  func.func @transform_1(%arg0: i32) -> (i32, i32) {
    %c0_i32 = arith.constant 0 : i32
    %c0_i32_0 = arith.constant 0 : i32
    %c0_i32_1 = arith.constant 0 : i32
    return %c0_i32, %c0_i32_0 : i32, i32
  }
  func.func @transform_2(%arg0: i32) -> (i32, i32) {
    %c0_i32 = arith.constant 0 : i32
    %c0_i32_0 = arith.constant 0 : i32
    %c0_i32_1 = arith.constant 0 : i32
    return %c0_i32, %c0_i32_0 : i32, i32
  }
  func.func @transform_3(%arg0: i32) -> (i32, i32) {
    %c0_i32 = arith.constant 0 : i32
    %c0_i32_0 = arith.constant 0 : i32
    %c0_i32_1 = arith.constant 0 : i32
    return %c0_i32, %c0_i32_0 : i32, i32
  }
  func.func @transform_4(%arg0: i32) -> (i32, i32) {
    %c0_i32 = arith.constant 0 : i32
    %c0_i32_0 = arith.constant 0 : i32
    %c0_i32_1 = arith.constant 0 : i32
    return %c0_i32, %c0_i32_0 : i32, i32
  }
  func.func @transform_5(%arg0: i32) -> (i32, i32) {
    %c0_i32 = arith.constant 0 : i32
    %c0_i32_0 = arith.constant 0 : i32
    return %c0_i32, %arg0 : i32, i32
  }
}

</mosaic_0001>

<llo_original>
// kernel: simple_network_forward_feature_major.1
$region0: #{simple_network_forward_feature_major.1}
  #allocation0 [shape = 'u32[]', space=smem, size = 0x4, offset = 0x4, fixed_abs, tag = 'smem constant byte address 0x4 - core index']
  #allocation1 [shape = 'u32[72,128]{1,0:T(1,128)}', space=vmem, size = 0x9000, scoped, tag = 'internal scratch']
  %s0 = inlined_call_operand.vmem [shape: f32[10,8], index: 0, kind: input, shape index: {}]
  %s1 = inlined_call_operand.vmem [shape: f32[50,10], index: 1, kind: input, shape index: {}]
  %s2 = inlined_call_operand.vmem [shape: f32[50,1], index: 2, kind: input, shape index: {}]
  %s3 = inlined_call_operand.vmem [shape: f32[2,50], index: 3, kind: input, shape index: {}]
  %s4 = inlined_call_operand.vmem [shape: f32[2,1], index: 4, kind: input, shape index: {}]
  %s5 = inlined_call_operand.hbm [shape: f32[2,8], index: 5, kind: output, shape index: {}]
  %s6 = sld [smem:[#allocation0]]
  $region30: #{simple_network_forward_feature_major.1} parent=0
    _
  %s8 = ssub.s32 1, %s6
  %s9 = scalar_select 0, %s8, %s6
  $region1: #{simple_network_forward_feature_major.1} parent=0
    #allocation2 [shape = 'u8[1024]{0}', space=vmem, size = 0x400, scoped, tag = 'output window, operand 0, single buffered']
    #allocation3 [shape = 's32[1]{0}', space=sflag, size = 0x4, scoped, tag = 'scoped memory for simple_network_forward_feature_major.1']
    %10 = vsyncpa [#allocation3], 0
    // Predicated region
    $region2: #{simple_network_forward_feature_major.1} parent=1 // pred_check
      _
    $region3: #{simple_network_forward_feature_major.1} parent=1 // pred_check_branch
      %12 = sbr.rel (0) target = $region5
    $region4: #{simple_network_forward_feature_major.1} parent=1 // pred_region
      _
    $region5: #{simple_network_forward_feature_major.1} parent=1 // pred_fallthru
      _
    // Predicated region
    $region6: #{simple_network_forward_feature_major.1} parent=1 // pred_check
      _
    $region7: #{simple_network_forward_feature_major.1} parent=1 // pred_check_branch
      %14 = sbr.rel (0) target = $region9
    $region8: #{simple_network_forward_feature_major.1} parent=1 // pred_region
      _
    $region9: #{simple_network_forward_feature_major.1} parent=1 // pred_fallthru
      _
    // Predicated region
    $region10: #{simple_network_forward_feature_major.1} parent=1 // pred_check
      _
    $region11: #{simple_network_forward_feature_major.1} parent=1 // pred_check_branch
      %16 = sbr.rel (0) target = $region13
    $region12: #{simple_network_forward_feature_major.1} parent=1 // pred_region
      _
    $region13: #{simple_network_forward_feature_major.1} parent=1 // pred_fallthru
      _
    // Predicated region
    $region14: #{simple_network_forward_feature_major.1} parent=1 // pred_check
      _
    $region15: #{simple_network_forward_feature_major.1} parent=1 // pred_check_branch
      %18 = sbr.rel (0) target = $region17
    $region16: #{simple_network_forward_feature_major.1} parent=1 // pred_region
      _
    $region17: #{simple_network_forward_feature_major.1} parent=1 // pred_fallthru
      _
    // Predicated region
    $region18: #{simple_network_forward_feature_major.1} parent=1 // pred_check
      _
    $region19: #{simple_network_forward_feature_major.1} parent=1 // pred_check_branch
      %20 = sbr.rel (0) target = $region21
    $region20: #{simple_network_forward_feature_major.1} parent=1 // pred_region
      _
    $region21: #{simple_network_forward_feature_major.1} parent=1 // pred_fallthru
      _
    %v21 = vld [vmem:[%s0] sm:$0xff]
    %v22 = vld [vmem:[%s0 + $0x8] sm:$0x3]
    %v23 = vld [vmem:[%s1] sm:$0xff]
    %v24 = vld [vmem:[%s1 + $0x8] sm:$0xff]
    %v25 = vld [vmem:[%s1 + $0x10] sm:$0xff]
    %v26 = vld [vmem:[%s1 + $0x18] sm:$0xff]
    %v27 = vld [vmem:[%s1 + $0x20] sm:$0xff]
    %v28 = vld [vmem:[%s1 + $0x28] sm:$0xff]
    %v29 = vld [vmem:[%s1 + $0x30] sm:$0x3]
    %v30 = vld [vmem:[%s3] sm:$0x3]
    %v31 = vld [vmem:[%s2] sm:$0xff]
    %v32 = vld [vmem:[%s2 + $0x8] sm:$0xff]
    %v33 = vld [vmem:[%s2 + $0x10] sm:$0xff]
    %v34 = vld [vmem:[%s2 + $0x18] sm:$0xff]
    %v35 = vld [vmem:[%s2 + $0x20] sm:$0xff]
    %v36 = vld [vmem:[%s2 + $0x28] sm:$0xff]
    %v37 = vld [vmem:[%s2 + $0x30] sm:$0x3]
    %39 = vset.pattern.permute.xlu0 0
    %40 = vperm.xlu0 %39, %v31
    %v41 = vpop.permute.xlu0 %40
    %44 = vset.pattern.permute.xlu0 0
    %45 = vperm.xlu0 %44, %v32
    %v46 = vpop.permute.xlu0 %45
    %49 = vset.pattern.permute.xlu0 0
    %50 = vperm.xlu0 %49, %v33
    %v51 = vpop.permute.xlu0 %50
    %54 = vset.pattern.permute.xlu0 0
    %55 = vperm.xlu0 %54, %v34
    %v56 = vpop.permute.xlu0 %55
    %59 = vset.pattern.permute.xlu0 0
    %60 = vperm.xlu0 %59, %v35
    %v61 = vpop.permute.xlu0 %60
    %64 = vset.pattern.permute.xlu0 0
    %65 = vperm.xlu0 %64, %v36
    %v66 = vpop.permute.xlu0 %65
    %69 = vset.pattern.permute.xlu0 0
    %70 = vperm.xlu0 %69, %v37
    %v71 = vpop.permute.xlu0 %70
    %vm73 = vcmask 80896
    %v75 = vsel %vm73, %v23, 0
    %v78 = vsel %vm73, %v24, 0
    %v81 = vsel %vm73, %v25, 0
    %v84 = vsel %vm73, %v26, 0
    %v87 = vsel %vm73, %v27, 0
    %v90 = vsel %vm73, %v28, 0
    %v93 = vsel %vm73, %v29, 0
    %vm95 = vcmask 1041408
    %v97 = vsel %vm95, %v22, 0
    %99 = vmatpush.msra.mxu0 0.0
    %100 = vmatpush.msra.mxu0 0.0
    %101 = vmatpush.msra.mxu0 0.0
    %102 = vmatpush.msra.mxu0 0.0
    %103 = vmatpush.msra.mxu0 0.0
    %104 = vmatpush.msra.mxu0 0.0
    %105 = vmatpush.msra.mxu0 0.0
    %106 = vmatpush.msra.mxu0 0.0
    %107 = vmatpush.msra.mxu0 0.0
    %108 = vmatpush.msra.mxu0 0.0
    %109 = vmatpush.msra.mxu0 0.0
    %110 = vmatpush.msra.mxu0 0.0
    %111 = vmatpush.msra.mxu0 0.0
    %112 = vmatpush.msra.mxu0 0.0
    %113 = vmatpush.msra.mxu0 %v97
    %114 = vmatpush.msra.mxu0 %v21
    %115 = vmatmul.f32.gmra.mxu0 %v75
    %v116 = vpop.f32.mrf.mxu0
    %v117 = vadd.f32 %v41, %v116
    %118 = vmatmul.f32.gmra.mxu0 %v78
    %v119 = vpop.f32.mrf.mxu0
    %v120 = vadd.f32 %v46, %v119
    %121 = vmatmul.f32.gmra.mxu0 %v81
    %v122 = vpop.f32.mrf.mxu0
    %v123 = vadd.f32 %v51, %v122
    %124 = vmatmul.f32.gmra.mxu0 %v84
    %v125 = vpop.f32.mrf.mxu0
    %v126 = vadd.f32 %v56, %v125
    %127 = vmatmul.f32.gmra.mxu0 %v87
    %v128 = vpop.f32.mrf.mxu0
    %v129 = vadd.f32 %v61, %v128
    %130 = vmatmul.f32.gmra.mxu0 %v90
    %v131 = vpop.f32.mrf.mxu0
    %v132 = vadd.f32 %v66, %v131
    %133 = vmatmul.f32.gmra.mxu0 %v93
    %v134 = vpop.f32.mrf.mxu0
    %v135 = vadd.f32 %v71, %v134
    %136 = vdwg.mxu0
    %v137 = vmax.f32 %v117, 0.0
    %v138 = vmax.f32 %v120, 0.0
    %v139 = vmax.f32 %v123, 0.0
    %v140 = vmax.f32 %v126, 0.0
    %v141 = vmax.f32 %v129, 0.0
    %v142 = vmax.f32 %v132, 0.0
    %v143 = vmax.f32 %v135, 0.0
    %v144 = vld [vmem:[%s4] sm:$0x3]
    %146 = vset.pattern.permute.xlu0 0
    %147 = vperm.xlu0 %146, %v144
    %v148 = vpop.permute.xlu0 %147
    %vm150 = vcmask 408576
    %v152 = vsel %vm150, %v30, 0
    %v155 = vsel %vm95, %v143, 0
    %157 = vmatpush.msra.mxu0 0.0
    %158 = vmatpush.msra.mxu0 0.0
    %159 = vmatpush.msra.mxu0 0.0
    %160 = vmatpush.msra.mxu0 0.0
    %161 = vmatpush.msra.mxu0 0.0
    %162 = vmatpush.msra.mxu0 0.0
    %163 = vmatpush.msra.mxu0 0.0
    %164 = vmatpush.msra.mxu0 0.0
    %165 = vmatpush.msra.mxu0 0.0
    %166 = vmatpush.msra.mxu0 %v155
    %167 = vmatpush.msra.mxu0 %v142
    %168 = vmatpush.msra.mxu0 %v141
    %169 = vmatpush.msra.mxu0 %v140
    %170 = vmatpush.msra.mxu0 %v139
    %171 = vmatpush.msra.mxu0 %v138
    %172 = vmatpush.msra.mxu0 %v137
    %173 = vmatmul.f32.gmra.mxu0 %v152
    %v174 = vpop.f32.mrf.mxu0
    %v175 = vadd.f32 %v148, %v174
    %176 = vdwg.mxu0
    %177 = vst [vmem:[#allocation2] sm:$0x3] %v175
    // Predicated region
    $region22: #{simple_network_forward_feature_major.1} parent=1 // pred_check
      _
    $region23: #{simple_network_forward_feature_major.1} parent=1 // pred_check_branch
      %179 = sbr.rel (0) target = $region25
    $region24: #{simple_network_forward_feature_major.1} parent=1 // pred_region
      %181 = vsyncadd [#allocation3], 0
      %s183 = sshll.u32 [#allocation2], 4
      %s184 = int_to_ptr.vmem [resolvable:$true] %s183
      %s185 = sshll.u32 %s5, 4
      %s186 = int_to_ptr.hbm [resolvable:$true] %s185
      %188 = dma.vmem_to_hbm [thread:$0]  %s184, 32, %s186, [#allocation3]
    $region25: #{simple_network_forward_feature_major.1} parent=1 // pred_fallthru
      _
    // Predicated region
    $region26: #{simple_network_forward_feature_major.1} parent=1 // pred_check
      _
    $region27: #{simple_network_forward_feature_major.1} parent=1 // pred_check_branch
      %190 = sbr.rel (0) target = $region29
    $region28: #{simple_network_forward_feature_major.1} parent=1 // pred_region
      %192 = dma.done [#allocation3], 32
    $region29: #{simple_network_forward_feature_major.1} parent=1 // pred_fallthru
      _
    %193 = vsyncpa [#allocation3], 1

</llo_original>
